<compile_context>
chip_gen: v7x
topology: tpu7x:2x2x1
jax: 0.10.0
libtpu: 0.0.40
codegen_flags: <defaults>
</compile_context>

<pallas_src>
import functools

import jax
import jax.numpy as jnp
from jax.experimental import pallas as pl
from jax.experimental.pallas import tpu as pltpu

R_PAD = 128  # LoRA rank padded to one full lane width (lane-dense A^T / B^T).


def _round_up(x, m):
    return ((x + m - 1) // m) * m


def _pick_tile(dim, cap):
    """Largest tile <= cap dividing `dim` (dim is a 128-multiple).  Prefer
    256-multiples (v6e/v7x MXU is 2x256x256), fall back to 128-multiples."""
    cap = min(cap, dim)
    for step in (256, 128):
        t = (cap // step) * step
        while t >= step:
            if dim % t == 0:
                return t
            t -= step
    return 128


@functools.lru_cache(maxsize=1)
def _vmem_limit_bytes():
    """Generation-aware VMEM budget: ~3/4 of physical, capped.  v7x (64 MiB)
    -> 48 MiB, v5e/v6e (128 MiB) -> 96 MiB."""
    try:
        cap = pltpu.get_tpu_info().vmem_capacity_bytes
    except Exception:
        cap = 64 * 1024 * 1024
    return max(32 * 1024 * 1024, min(int(cap * 3 // 4), 96 * 1024 * 1024))


# ----------------------------------------------------------------------------
# Kernels
# ----------------------------------------------------------------------------
def _lora_linear_kernel(x_ref, wt_ref, b_ref, at_ref, bt_ref, o_ref,
                        acc_ref, z_ref, *, apply_relu, tk):
    j = pl.program_id(1)
    k = pl.program_id(2)
    last_k = pl.num_programs(2) - 1

    @pl.when(k == 0)
    def _():
        acc_ref[...] = jnp.zeros_like(acc_ref)

    @pl.when(jnp.logical_and(j == 0, k == 0))
    def _():
        z_ref[...] = jnp.zeros_like(z_ref)

    x = x_ref[...]                                                     # [tm, tk] bf16
    acc_ref[...] += jnp.dot(x, wt_ref[...],
                            preferred_element_type=jnp.float32)        # MXU, f32 acc

    # z = x_row_block @ A^T is independent of the output-N (j) axis: accumulate
    # it only on the first j pass and reuse the VMEM scratch for all other j
    # tiles of this row block.  Correct ONLY because (a) the grid is (i, j, k)
    # with k innermost, (b) the j axis is "arbitrary" (sequential within a
    # core), (c) this statement precedes the k==last epilogue.  A^T is fully
    # VMEM-resident (index_map (0, 0)); slice the current k chunk out of it.
    @pl.when(j == 0)
    def _():
        k_off = pl.multiple_of(k * tk, 128)
        z_ref[...] += jnp.dot(x, at_ref[pl.ds(k_off, tk), :],
                              preferred_element_type=jnp.float32)      # [tm, R_PAD]

    @pl.when(k == last_k)
    def _():
        # LoRA scale is already folded into B^T on the host.
        delta = jnp.dot(z_ref[...].astype(bt_ref.dtype), bt_ref[...],
                        preferred_element_type=jnp.float32)            # [tm, tn]
        y = acc_ref[...] + delta + b_ref[...]
        if apply_relu:
            y = jnp.maximum(y, 0.0)
        o_ref[...] = y.astype(o_ref.dtype)


def _linear_kernel(x_ref, wt_ref, b_ref, o_ref, acc_ref, *, apply_relu):
    k = pl.program_id(2)

    @pl.when(k == 0)
    def _():
        acc_ref[...] = jnp.zeros_like(acc_ref)

    acc_ref[...] += jnp.dot(x_ref[...], wt_ref[...],
                            preferred_element_type=jnp.float32)

    @pl.when(k == pl.num_programs(2) - 1)
    def _():
        y = acc_ref[...] + b_ref[...]
        if apply_relu:
            y = jnp.maximum(y, 0.0)
        o_ref[...] = y.astype(o_ref.dtype)


# ----------------------------------------------------------------------------
# Wrapper: tiled fused linear (+ optional LoRA adapter)
# ----------------------------------------------------------------------------
def _fused_linear(x, wt, b2, at, bt, *, apply_relu, out_dtype,
                  tm_cap=256, tn_cap=1024, tk_cap=1024,
                  compute_dtype=jnp.bfloat16):
    """x: [M, K_pad] in compute_dtype (already K-padded); wt: [K_pad, N_pad] bf16
    (pre-transposed, padded); b2: [1, N_pad] f32; at: [K_pad, R_PAD] bf16 or None;
    bt: [R_PAD, N_pad] bf16 (pre-scaled) or None.
    Returns the FULL padded [M_pad, N_pad] result in out_dtype (no slicing --
    padded rows/cols are inert downstream and sliced once at the very end)."""
    M, K_pad = x.shape
    assert wt.shape[0] == K_pad, "activation K-padding must match the weights"
    N_pad = wt.shape[1]
    assert x.dtype == jnp.dtype(compute_dtype)

    has_lora = at is not None

    # --- tile sizes ---------------------------------------------------------
    # tm rounded to 16 (bf16 packs two rows per sublane).
    tm = tm_cap if M >= tm_cap else _round_up(M, 16)
    if has_lora:
        # Only the M axis is "parallel" on the LoRA path (j must stay sequential
        # for the z-scratch reuse): make sure v7x's two TensorCores both get a
        # row block whenever there are enough real rows to split.
        while _round_up(M, tm) // tm < 2:
            tm_half = _round_up(max(tm // 2, 16), 16)
            if tm_half >= tm or M <= tm_half:
                break
            tm = tm_half
    M_pad = _round_up(M, tm)
    if M_pad != M:
        x = jnp.pad(x, ((0, M_pad - M), (0, 0)))

    tn = _pick_tile(N_pad, tn_cap)
    tk = _pick_tile(K_pad, tk_cap)   # tk == K_pad when it fits -> single k step
    grid = (M_pad // tm, N_pad // tn, K_pad // tk)

    out_itemsize = jnp.dtype(out_dtype).itemsize
    flops = 2 * M_pad * N_pad * K_pad
    bytes_accessed = (x.size * x.dtype.itemsize + wt.size * wt.dtype.itemsize
                      + b2.size * 4 + M_pad * N_pad * out_itemsize)
    if has_lora:
        flops += 2 * M_pad * K_pad * R_PAD + 2 * M_pad * R_PAD * N_pad
        bytes_accessed += at.size * at.dtype.itemsize + bt.size * bt.dtype.itemsize

    x_spec = pl.BlockSpec((tm, tk), lambda i, j, k: (i, k))
    wt_spec = pl.BlockSpec((tk, tn), lambda i, j, k: (k, j))
    b_spec = pl.BlockSpec((1, tn), lambda i, j, k: (0, j))
    out_spec = pl.BlockSpec((tm, tn), lambda i, j, k: (i, j))

    if has_lora:
        kernel = functools.partial(_lora_linear_kernel,
                                   apply_relu=apply_relu, tk=tk)
        in_specs = [x_spec, wt_spec, b_spec,
                    # A^T fully VMEM-resident (never re-DMA'd); sliced in-kernel.
                    pl.BlockSpec((K_pad, R_PAD), lambda i, j, k: (0, 0)),
                    pl.BlockSpec((R_PAD, tn), lambda i, j, k: (0, j))]
        scratch = [pltpu.VMEM((tm, tn), jnp.float32),      # base-matmul accumulator
                   pltpu.VMEM((tm, R_PAD), jnp.float32)]   # z = x @ A^T accumulator
        args = (x, wt, b2, at, bt)
        # j reuses the z scratch computed on its first pass -> j MUST stay
        # sequential ("arbitrary") and the grid order MUST remain (i, j, k)
        # with k innermost.  The M axis carries the v7x megacore split.
        dims = ("parallel", "arbitrary", "arbitrary")
    else:
        kernel = functools.partial(_linear_kernel, apply_relu=apply_relu)
        in_specs = [x_spec, wt_spec, b_spec]
        scratch = [pltpu.VMEM((tm, tn), jnp.float32)]
        args = (x, wt, b2)
        dims = ("parallel", "parallel", "arbitrary")

    return pl.pallas_call(
        kernel,
        out_shape=jax.ShapeDtypeStruct((M_pad, N_pad), out_dtype),
        grid_spec=pltpu.PrefetchScalarGridSpec(
            num_scalar_prefetch=0,
            grid=grid,
            in_specs=in_specs,
            out_specs=out_spec,
            scratch_shapes=scratch),
        compiler_params=pltpu.CompilerParams(
            dimension_semantics=dims,
            vmem_limit_bytes=_vmem_limit_bytes()),
        cost_estimate=pl.CostEstimate(flops=flops, transcendentals=0,
                                      bytes_accessed=bytes_accessed),
    )(*args)


# ----------------------------------------------------------------------------
# PEFTNet glue: base model (2 Linear layers + ReLU) with every Linear replaced
# by the LoRA replacement module (mirrors PEFTNet.apply_peft(): only module
# types in `factorize_list` and not in `ignore_list` are replaced).  All weight
# preprocessing (transpose, 128-padding, bf16 cast, scale folding) happens once
# at parameter-build time, never on the forward hot path.
# ----------------------------------------------------------------------------
class PEFTNetJax:
    def __init__(self, key, d_in, d_hidden, d_out, rank=4, alpha=8.0,
                 ignore_list=None, factorize_list=None, fan_in_fan_out_map=None,
                 compute_dtype=jnp.bfloat16):
        self.factorize_list = ['Linear'] if factorize_list is None else factorize_list
        self.fan_in_fan_out_map = ({'Conv1D': True, 'Linear': False}
                                   if fan_in_fan_out_map is None else fan_in_fan_out_map)
        self.ignore_list = [] if ignore_list is None else ignore_list
        self.scale = alpha / rank
        self.compute_dtype = compute_dtype

        ks = jax.random.split(key, 8)
        layer_cfg = [
            ('fc1', 'Linear', d_in, d_hidden, ks[0], ks[1], ks[4], ks[5]),
            ('fc2', 'Linear', d_hidden, d_out, ks[2], ks[3], ks[6], ks[7]),
        ]
        self.params = {}
        for name, mtype, k_in, n_out, kw, kb, ka, kb2 in layer_cfg:
            fifo = self.fan_in_fan_out_map.get(mtype, False)
            # Base (frozen) weight in PyTorch layout: [out, in] (or [in, out] if fifo).
            w = jax.random.normal(kw, (n_out, k_in), jnp.float32) * 0.1
            b = jax.random.normal(kb, (n_out,), jnp.float32) * 0.1
            K_pad = _round_up(k_in, 128)
            N_pad = _round_up(n_out, 128)
            wt = w if fifo else w.T                                  # [K, N]
            wt_pad = jnp.zeros((K_pad, N_pad), jnp.float32).at[:k_in, :n_out].set(wt)
            b_pad = jnp.zeros((1, N_pad), jnp.float32).at[0, :n_out].set(b)
            entry = {'wt': wt_pad.astype(compute_dtype), 'b': b_pad,
                     'at': None, 'bt': None, 'k': k_in, 'n': n_out}
            if mtype in self.factorize_list and name not in self.ignore_list:
                la = jax.random.normal(ka, (rank, k_in), jnp.float32) * 0.05    # [r, K]
                lb = jax.random.normal(kb2, (n_out, rank), jnp.float32) * 0.05  # [N, r]
                at_pad = jnp.zeros((K_pad, R_PAD), jnp.float32).at[:k_in, :rank].set(la.T)
                bt_pad = jnp.zeros((R_PAD, N_pad), jnp.float32).at[:rank, :n_out].set(
                    self.scale * lb.T)  # fold LoRA scale into B^T once (host side)
                entry['at'] = at_pad.astype(compute_dtype)
                entry['bt'] = bt_pad.astype(compute_dtype)
            self.params[name] = entry

    def merge(self):
        """Mirror of PEFTNet.merge(): fold the low-rank adapters into the base
        weight (W_eff^T = W^T + A^T @ (scale*B^T)), done once on the host.
        Merged layers then run as plain matmuls with a fully 'parallel' j axis
        (full v7x megacore split, no z scratch, no delta matmul, no A/B DMAs)."""
        for entry in self.params.values():
            if entry['at'] is not None:
                delta = jnp.dot(entry['at'].astype(jnp.float32),
                                entry['bt'].astype(jnp.float32))
                entry['wt'] = (entry['wt'].astype(jnp.float32)
                               + delta).astype(self.compute_dtype)
                entry['at'] = None
                entry['bt'] = None
        return self

    def __call__(self, x, tile_caps=(256, 1024, 1024)):
        B, S, D = x.shape
        M = B * S
        h = x.reshape(M, D)
        # K-pad and bf16-cast ONCE; activations then stay in the padded bf16
        # layout between layers (padded columns are provably zero because W^T,
        # bias and B^T are zero-padded, and ReLU(0) == 0).
        K_pad = self.params['fc1']['wt'].shape[0]
        if D != K_pad:
            h = jnp.pad(h, ((0, 0), (0, K_pad - D)))
        h = h.astype(self.compute_dtype)
        h = self._layer('fc1', h, apply_relu=True,
                        out_dtype=self.compute_dtype, tile_caps=tile_caps)
        h = self._layer('fc2', h, apply_relu=False,
                        out_dtype=jnp.float32, tile_caps=tile_caps)
        n_out = self.params['fc2']['n']
        return h[:M, :n_out].reshape(B, S, n_out)

    def _layer(self, name, h, apply_relu, out_dtype, tile_caps):
        p = self.params[name]
        tm_cap, tn_cap, tk_cap = tile_caps
        return _fused_linear(h, p['wt'], p['b'], p['at'], p['bt'],
                             apply_relu=apply_relu, out_dtype=out_dtype,
                             tm_cap=tm_cap, tn_cap=tn_cap, tk_cap=tk_cap,
                             compute_dtype=self.compute_dtype)


# ----------------------------------------------------------------------------
# Pure-JAX reference (same bf16 padded params, fp32 accumulation).
# ----------------------------------------------------------------------------
def reference_forward(net, x):
    B, S, D = x.shape
    h = x.reshape(B * S, D)
    for name, relu in (('fc1', True), ('fc2', False)):
        p = net.params[name]
        K_pad = p['wt'].shape[0]
        hp = jnp.pad(h, ((0, 0), (0, K_pad - h.shape[1]))).astype(net.compute_dtype)
        y = jnp.dot(hp, p['wt'], preferred_element_type=jnp.float32) + p['b']
        if p['at'] is not None:
            z = jnp.dot(hp, p['at'], preferred_element_type=jnp.float32)
            y = y + jnp.dot(z.astype(net.compute_dtype), p['bt'],
                            preferred_element_type=jnp.float32)
        if relu:
            y = jnp.maximum(y, 0.0)
        if name == 'fc1':
            y = y.astype(net.compute_dtype)   # kernel emits bf16 intermediates
        h = y[:, :p['n']].astype(jnp.float32)
    return h.reshape(B, S, -1)


if __name__ == "__main__":
    key = jax.random.PRNGKey(0)
    k_model, k_model2, k_x, k_x2 = jax.random.split(key, 4)

    # --- Test 1: small shapes (everything fits one 128-padded tile), LoRA path.
    B, S, D_IN, D_HID, D_OUT, RANK = 2, 8, 32, 64, 48, 4
    net = PEFTNetJax(k_model, D_IN, D_HID, D_OUT, rank=RANK, alpha=8.0)
    x = jax.random.normal(k_x, (B, S, D_IN), jnp.float32)
    out = jax.block_until_ready(net(x))
    ref = reference_forward(net, x)
    assert out.shape == (B, S, D_OUT)
    assert jnp.allclose(out, ref, atol=2e-3, rtol=2e-3), "test1 mismatch vs reference"

    # --- Test 2: multi-tile grid -- exercises the K-reduction accumulator, the
    #     z-scratch reuse across output-N tiles, the resident-A^T k-slicing,
    #     multiple M row blocks (>=2 for megacore), and the plain-linear
    #     specialization for an ignored (un-replaced) layer. -------------------
    B2, S2, D_IN2, D_HID2, D_OUT2 = 2, 64, 384, 768, 256
    net2 = PEFTNetJax(k_model2, D_IN2, D_HID2, D_OUT2, rank=RANK, alpha=8.0,
                      ignore_list=['fc2'])
    x2 = jax.random.normal(k_x2, (B2, S2, D_IN2), jnp.float32)
    out2 = jax.block_until_ready(net2(x2, tile_caps=(64, 256, 128)))
    ref2 = reference_forward(net2, x2)
    assert out2.shape == (B2, S2, D_OUT2)
    assert jnp.allclose(out2, ref2, atol=1e-2, rtol=1e-2), "test2 mismatch vs reference"

    # --- Test 3: merged-weight inference mode (PEFTNet.merge() analogue) ------
    net.merge()
    out_m = jax.block_until_ready(net(x))
    ref_m = reference_forward(net, x)
    assert jnp.allclose(out_m, ref_m, atol=2e-3, rtol=2e-3), "test3 mismatch vs reference"
    # merged vs unmerged only differ by bf16 rounding of the folded weights
    assert jnp.allclose(out_m, out, atol=5e-2, rtol=5e-2), "merged vs unmerged drift"

    print("KERNEL_OK")
</pallas_src>

<mosaic_0001>
module attributes {stable_mosaic.version = 11 : i64} {
  func.func @_lora_linear_kernel(%arg0: i32, %arg1: i32, %arg2: i32, %arg3: memref<16x128xbf16, #tpu.memory_space<vmem>>, %arg4: memref<128x128xbf16, #tpu.memory_space<vmem>>, %arg5: memref<1x128xf32, #tpu.memory_space<vmem>>, %arg6: memref<128x128xbf16, #tpu.memory_space<vmem>>, %arg7: memref<128x128xbf16, #tpu.memory_space<vmem>>, %arg8: memref<16x128xbf16, #tpu.memory_space<vmem>>, %arg9: memref<16x128xf32, #tpu.memory_space<vmem>>, %arg10: memref<16x128xf32, #tpu.memory_space<vmem>>) attributes {dimension_semantics = [#tpu.dimension_semantics<parallel>, #tpu.dimension_semantics<arbitrary>, #tpu.dimension_semantics<arbitrary>], iteration_bounds = array<i64: 1, 1, 1>, scalar_prefetch = 0 : i64, scratch_operands = 2 : i64, tpu.core_type = #tpu.core_type<tc>, window_params = [{transform_indices = @transform_0, window_bounds = array<i64: 16, 128>}, {transform_indices = @transform_1, window_bounds = array<i64: 128, 128>}, {transform_indices = @transform_2, window_bounds = array<i64: 1, 128>}, {pipeline_mode = #tpu.pipeline_mode<synchronous>, transform_indices = @transform_3, window_bounds = array<i64: 128, 128>}, {transform_indices = @transform_4, window_bounds = array<i64: 128, 128>}, {transform_indices = @transform_5, window_bounds = array<i64: 16, 128>}]} {
    %c0_i32 = arith.constant 0 : i32
    %0 = arith.cmpi eq, %arg2, %c0_i32 : i32
    %1 = arith.extui %0 : i1 to i32
    %c0_i32_0 = arith.constant 0 : i32
    %2 = arith.cmpi ne, %1, %c0_i32_0 : i32
    scf.if %2 {
      %cst_15 = arith.constant 0.000000e+00 : f32
      %20 = vector.broadcast %cst_15 : f32 to vector<16x128xf32>
      %c0_16 = arith.constant 0 : index
      %c0_17 = arith.constant 0 : index
      %21 = vector.load %arg9[%c0_16, %c0_17] : memref<16x128xf32, #tpu.memory_space<vmem>>, vector<16x128xf32>
      tpu.vector_store %arg9[%c0_16, %c0_17], %20 {strides = array<i32>} : memref<16x128xf32, #tpu.memory_space<vmem>>, vector<16x128xf32>,
    } else {
    }
    %c0_i32_1 = arith.constant 0 : i32
    %3 = arith.cmpi eq, %arg1, %c0_i32_1 : i32
    %c0_i32_2 = arith.constant 0 : i32
    %4 = arith.cmpi eq, %arg2, %c0_i32_2 : i32
    %5 = arith.andi %3, %4 : i1
    %6 = arith.extui %5 : i1 to i32
    %c0_i32_3 = arith.constant 0 : i32
    %7 = arith.cmpi ne, %6, %c0_i32_3 : i32
    scf.if %7 {
      %cst_15 = arith.constant 0.000000e+00 : f32
      %20 = vector.broadcast %cst_15 : f32 to vector<16x128xf32>
      %c0_16 = arith.constant 0 : index
      %c0_17 = arith.constant 0 : index
      %21 = vector.load %arg10[%c0_16, %c0_17] : memref<16x128xf32, #tpu.memory_space<vmem>>, vector<16x128xf32>
      tpu.vector_store %arg10[%c0_16, %c0_17], %20 {strides = array<i32>} : memref<16x128xf32, #tpu.memory_space<vmem>>, vector<16x128xf32>,
    } else {
    }
    %c0 = arith.constant 0 : index
    %c0_4 = arith.constant 0 : index
    %8 = vector.load %arg3[%c0, %c0_4] : memref<16x128xbf16, #tpu.memory_space<vmem>>, vector<16x128xbf16>
    %c0_5 = arith.constant 0 : index
    %c0_6 = arith.constant 0 : index
    %9 = vector.load %arg9[%c0_5, %c0_6] : memref<16x128xf32, #tpu.memory_space<vmem>>, vector<16x128xf32>
    %c0_7 = arith.constant 0 : index
    %c0_8 = arith.constant 0 : index
    %10 = vector.load %arg4[%c0_7, %c0_8] : memref<128x128xbf16, #tpu.memory_space<vmem>>, vector<128x128xbf16>
    %cst = arith.constant dense<0.000000e+00> : vector<16x128xf32>
    %11 = tpu.matmul %8, %10, %cst {dimension_numbers = #tpu.dot_dimension_numbers<[1], [0], [0], [1], [0, 0, 1, 1], [], []>} : vector<16x128xbf16>, vector<128x128xbf16>, vector<16x128xf32> -> vector<16x128xf32>
    %12 = arith.addf %9, %11 : vector<16x128xf32>
    %c0_9 = arith.constant 0 : index
    %c0_10 = arith.constant 0 : index
    %13 = vector.load %arg9[%c0_9, %c0_10] : memref<16x128xf32, #tpu.memory_space<vmem>>, vector<16x128xf32>
    tpu.vector_store %arg9[%c0_9, %c0_10], %12 {strides = array<i32>} : memref<16x128xf32, #tpu.memory_space<vmem>>, vector<16x128xf32>,
    %c0_i32_11 = arith.constant 0 : i32
    %14 = arith.cmpi eq, %arg1, %c0_i32_11 : i32
    %15 = arith.extui %14 : i1 to i32
    %c0_i32_12 = arith.constant 0 : i32
    %16 = arith.cmpi ne, %15, %c0_i32_12 : i32
    scf.if %16 {
      %c128_i32 = arith.constant 128 : i32
      %20 = arith.muli %arg2, %c128_i32 : i32
      %21 = tpu.assume_multiple %20, 128 : i32
      %c0_15 = arith.constant 0 : index
      %c0_16 = arith.constant 0 : index
      %22 = vector.load %arg10[%c0_15, %c0_16] : memref<16x128xf32, #tpu.memory_space<vmem>>, vector<16x128xf32>
      %23 = arith.index_cast %21 : i32 to index
      %c0_17 = arith.constant 0 : index
      %24 = vector.load %arg6[%23, %c0_17] : memref<128x128xbf16, #tpu.memory_space<vmem>>, vector<128x128xbf16>
      %cst_18 = arith.constant dense<0.000000e+00> : vector<16x128xf32>
      %25 = tpu.matmul %8, %24, %cst_18 {dimension_numbers = #tpu.dot_dimension_numbers<[1], [0], [0], [1], [0, 0, 1, 1], [], []>} : vector<16x128xbf16>, vector<128x128xbf16>, vector<16x128xf32> -> vector<16x128xf32>
      %26 = arith.addf %22, %25 : vector<16x128xf32>
      %c0_19 = arith.constant 0 : index
      %c0_20 = arith.constant 0 : index
      %27 = vector.load %arg10[%c0_19, %c0_20] : memref<16x128xf32, #tpu.memory_space<vmem>>, vector<16x128xf32>
      tpu.vector_store %arg10[%c0_19, %c0_20], %26 {strides = array<i32>} : memref<16x128xf32, #tpu.memory_space<vmem>>, vector<16x128xf32>,
    } else {
    }
    %c0_i32_13 = arith.constant 0 : i32
    %17 = arith.cmpi eq, %arg2, %c0_i32_13 : i32
    %18 = arith.extui %17 : i1 to i32
    %c0_i32_14 = arith.constant 0 : i32
    %19 = arith.cmpi ne, %18, %c0_i32_14 : i32
    scf.if %19 {
      %c0_15 = arith.constant 0 : index
      %c0_16 = arith.constant 0 : index
      %20 = vector.load %arg10[%c0_15, %c0_16] : memref<16x128xf32, #tpu.memory_space<vmem>>, vector<16x128xf32>
      %21 = arith.truncf %20 : vector<16x128xf32> to vector<16x128xbf16>
      %c0_17 = arith.constant 0 : index
      %c0_18 = arith.constant 0 : index
      %22 = vector.load %arg7[%c0_17, %c0_18] : memref<128x128xbf16, #tpu.memory_space<vmem>>, vector<128x128xbf16>
      %cst_19 = arith.constant dense<0.000000e+00> : vector<16x128xf32>
      %23 = tpu.matmul %21, %22, %cst_19 {dimension_numbers = #tpu.dot_dimension_numbers<[1], [0], [0], [1], [0, 0, 1, 1], [], []>} : vector<16x128xbf16>, vector<128x128xbf16>, vector<16x128xf32> -> vector<16x128xf32>
      %c0_20 = arith.constant 0 : index
      %c0_21 = arith.constant 0 : index
      %24 = vector.load %arg9[%c0_20, %c0_21] : memref<16x128xf32, #tpu.memory_space<vmem>>, vector<16x128xf32>
      %25 = arith.addf %24, %23 : vector<16x128xf32>
      %c0_22 = arith.constant 0 : index
      %c0_23 = arith.constant 0 : index
      %26 = vector.load %arg5[%c0_22, %c0_23] : memref<1x128xf32, #tpu.memory_space<vmem>>, vector<1x128xf32>
      %27 = vector.broadcast %26 : vector<1x128xf32> to vector<16x128xf32>
      %28 = arith.addf %25, %27 : vector<16x128xf32>
      %cst_24 = arith.constant 0.000000e+00 : f32
      %29 = vector.broadcast %cst_24 : f32 to vector<16x128xf32>
      %30 = arith.maximumf %28, %29 : vector<16x128xf32>
      %31 = arith.truncf %30 : vector<16x128xf32> to vector<16x128xbf16>
      %c0_25 = arith.constant 0 : index
      %c0_26 = arith.constant 0 : index
      %32 = vector.load %arg8[%c0_25, %c0_26] : memref<16x128xbf16, #tpu.memory_space<vmem>>, vector<16x128xbf16>
      tpu.vector_store %arg8[%c0_25, %c0_26], %31 {strides = array<i32>} : memref<16x128xbf16, #tpu.memory_space<vmem>>, vector<16x128xbf16>,
    } else {
    }
    return
  }
  func.func @transform_0(%arg0: i32, %arg1: i32, %arg2: i32) -> (i32, i32) {
    %c0_i32 = arith.constant 0 : i32
    return %arg0, %arg2 : i32, i32
  }
  func.func @transform_1(%arg0: i32, %arg1: i32, %arg2: i32) -> (i32, i32) {
    %c0_i32 = arith.constant 0 : i32
    return %arg2, %arg1 : i32, i32
  }
  func.func @transform_2(%arg0: i32, %arg1: i32, %arg2: i32) -> (i32, i32) {
    %c0_i32 = arith.constant 0 : i32
    %c0_i32_0 = arith.constant 0 : i32
    return %c0_i32, %arg1 : i32, i32
  }
  func.func @transform_3(%arg0: i32, %arg1: i32, %arg2: i32) -> (i32, i32) {
    %c0_i32 = arith.constant 0 : i32
    %c0_i32_0 = arith.constant 0 : i32
    %c0_i32_1 = arith.constant 0 : i32
    return %c0_i32, %c0_i32_0 : i32, i32
  }
  func.func @transform_4(%arg0: i32, %arg1: i32, %arg2: i32) -> (i32, i32) {
    %c0_i32 = arith.constant 0 : i32
    %c0_i32_0 = arith.constant 0 : i32
    return %c0_i32, %arg1 : i32, i32
  }
  func.func @transform_5(%arg0: i32, %arg1: i32, %arg2: i32) -> (i32, i32) {
    %c0_i32 = arith.constant 0 : i32
    return %arg0, %arg1 : i32, i32
  }
}

</mosaic_0001>

<llo_original>
// kernel: tpu_custom_call.1
$region0: #{tpu_custom_call.1}
  #allocation0 [shape = 'u32[]', space=smem, size = 0x4, offset = 0x4, fixed_abs, tag = 'smem constant byte address 0x4 - core index']
  #allocation1 [shape = 'u32[144,128]{1,0:T(1,128)}', space=vmem, size = 0x12000, scoped, tag = 'internal scratch']
  #allocation2 [shape = 'f32[16,128]{1,0:T(8,128)}', space=vmem, size = 0x2000, scoped, tag = 'scratch operand']
  #allocation3 [shape = 'f32[16,128]{1,0:T(8,128)}', space=vmem, size = 0x2000, scoped, tag = 'scratch operand']
  %s0 = inlined_call_operand.hbm [shape: bf16[16,128], index: 0, kind: input, shape index: {}]
  %s1 = inlined_call_operand.hbm [shape: bf16[128,128], index: 1, kind: input, shape index: {}]
  %s2 = inlined_call_operand.vmem [shape: f32[1,128], index: 2, kind: input, shape index: {}]
  %s3 = inlined_call_operand.hbm [shape: bf16[128,128], index: 3, kind: input, shape index: {}]
  %s4 = inlined_call_operand.hbm [shape: bf16[128,128], index: 4, kind: input, shape index: {}]
  %s5 = inlined_call_operand.hbm [shape: bf16[16,128], index: 5, kind: output, shape index: {}]
  %s6 = sld [smem:[#allocation0]]
  $region62: #{tpu_custom_call.1} parent=0
    _
  %s8 = ssub.s32 1, %s6
  %s9 = scalar_select 0, %s8, %s6
  $region1: #{tpu_custom_call.1} parent=0
    #allocation4 [shape = 'u8[4096]{0}', space=vmem, size = 0x1000, scoped, tag = 'input window, operand 0, single buffered']
    #allocation5 [shape = 's32[1]{0}', space=sflag, size = 0x4, scoped, tag = 'scoped memory for tpu_custom_call.1']
    #allocation6 [shape = 's32[1]{0}', space=sflag, size = 0x4, scoped, tag = 'scoped memory for tpu_custom_call.1']
    #allocation7 [shape = 'u8[32768]{0}', space=vmem, size = 0x8000, scoped, tag = 'input window, operand 1, single buffered']
    #allocation8 [shape = 's32[1]{0}', space=sflag, size = 0x4, scoped, tag = 'scoped memory for tpu_custom_call.1']
    #allocation9 [shape = 'u8[32768]{0}', space=vmem, size = 0x8000, scoped, tag = 'input window, operand 3, single buffered']
    #allocation10 [shape = 'u8[32768]{0}', space=vmem, size = 0x8000, scoped, tag = 'input window, operand 4, single buffered']
    #allocation11 [shape = 's32[1]{0}', space=sflag, size = 0x4, scoped, tag = 'scoped memory for tpu_custom_call.1']
    #allocation12 [shape = 'u8[4096]{0}', space=vmem, size = 0x1000, scoped, tag = 'output window, operand 0, single buffered']
    %10 = vsyncpa [#allocation5], 0
    %11 = vsyncpa [#allocation8], 0
    %12 = vsyncpa [#allocation11], 0
    %13 = vsyncpa [#allocation6], 0
    // Predicated region
    $region2: #{tpu_custom_call.1} parent=1 // pred_check
      _
    $region3: #{tpu_custom_call.1} parent=1 // pred_check_branch
      %15 = sbr.rel (0) target = $region5
    $region4: #{tpu_custom_call.1} parent=1 // pred_region
      %s17 = ssub.s32 128, 128
      %18 = vsyncadd [#allocation5], %s17
      %s19 = sshll.u32 [#allocation4], 4
      %s20 = int_to_ptr.vmem [resolvable:$true] %s19
      %25 = dma.hbm_to_vmem [thread:$0]  %s0, 128, %s20, [#allocation5], 64, 64, 4
    $region5: #{tpu_custom_call.1} parent=1 // pred_fallthru
      _
    // Predicated region
    $region6: #{tpu_custom_call.1} parent=1 // pred_check
      _
    $region7: #{tpu_custom_call.1} parent=1 // pred_check_branch
      %27 = sbr.rel (0) target = $region9
    $region8: #{tpu_custom_call.1} parent=1 // pred_region
      %s29 = ssub.s32 1024, 1024
      %30 = vsyncadd [#allocation8], %s29
      %s31 = sshll.u32 [#allocation7], 4
      %s32 = int_to_ptr.vmem [resolvable:$true] %s31
      %37 = dma.hbm_to_vmem [thread:$0]  %s1, 1024, %s32, [#allocation8], 64, 64, 4
    $region9: #{tpu_custom_call.1} parent=1 // pred_fallthru
      _
    // Predicated region
    $region10: #{tpu_custom_call.1} parent=1 // pred_check
      _
    $region11: #{tpu_custom_call.1} parent=1 // pred_check_branch
      %39 = sbr.rel (0) target = $region13
    $region12: #{tpu_custom_call.1} parent=1 // pred_region
      _
    $region13: #{tpu_custom_call.1} parent=1 // pred_fallthru
      _
    // Predicated region
    $region14: #{tpu_custom_call.1} parent=1 // pred_check
      _
    $region15: #{tpu_custom_call.1} parent=1 // pred_check_branch
      %41 = sbr.rel (0) target = $region17
    $region16: #{tpu_custom_call.1} parent=1 // pred_region
      %s43 = ssub.s32 1024, 1024
      %44 = vsyncadd [#allocation8], %s43
      %s45 = sshll.u32 [#allocation9], 4
      %s46 = int_to_ptr.vmem [resolvable:$true] %s45
      %51 = dma.hbm_to_vmem [thread:$0]  %s3, 1024, %s46, [#allocation8], 64, 64, 4
    $region17: #{tpu_custom_call.1} parent=1 // pred_fallthru
      _
    // Predicated region
    $region18: #{tpu_custom_call.1} parent=1 // pred_check
      _
    $region19: #{tpu_custom_call.1} parent=1 // pred_check_branch
      %53 = sbr.rel (0) target = $region21
    $region20: #{tpu_custom_call.1} parent=1 // pred_region
      %s55 = ssub.s32 1024, 1024
      %56 = vsyncadd [#allocation11], %s55
      %s57 = sshll.u32 [#allocation10], 4
      %s58 = int_to_ptr.vmem [resolvable:$true] %s57
      %63 = dma.hbm_to_vmem [thread:$0]  %s4, 1024, %s58, [#allocation11], 64, 64, 4
    $region21: #{tpu_custom_call.1} parent=1 // pred_fallthru
      _
    // Predicated region
    $region22: #{tpu_custom_call.1} parent=1 // pred_check
      _
    $region23: #{tpu_custom_call.1} parent=1 // pred_check_branch
      %65 = sbr.rel (0) target = $region25
    $region24: #{tpu_custom_call.1} parent=1 // pred_region
      %66 = dma.done [#allocation5], 128
    $region25: #{tpu_custom_call.1} parent=1 // pred_fallthru
      _
    // Predicated region
    $region26: #{tpu_custom_call.1} parent=1 // pred_check
      _
    $region27: #{tpu_custom_call.1} parent=1 // pred_check_branch
      %68 = sbr.rel (0) target = $region29
    $region28: #{tpu_custom_call.1} parent=1 // pred_region
      %69 = dma.done [#allocation8], 1024
    $region29: #{tpu_custom_call.1} parent=1 // pred_fallthru
      _
    // Predicated region
    $region30: #{tpu_custom_call.1} parent=1 // pred_check
      _
    $region31: #{tpu_custom_call.1} parent=1 // pred_check_branch
      %71 = sbr.rel (0) target = $region33
    $region32: #{tpu_custom_call.1} parent=1 // pred_region
      %72 = dma.done [#allocation8], 1024
    $region33: #{tpu_custom_call.1} parent=1 // pred_fallthru
      _
    // Predicated region
    $region34: #{tpu_custom_call.1} parent=1 // pred_check
      _
    $region35: #{tpu_custom_call.1} parent=1 // pred_check_branch
      %74 = sbr.rel (0) target = $region37
    $region36: #{tpu_custom_call.1} parent=1 // pred_region
      %75 = dma.done [#allocation11], 1024
    $region37: #{tpu_custom_call.1} parent=1 // pred_fallthru
      _
    %p77 = scmp.eq.s32.totalorder 0, 0
    // Predicated region
    $region38: #{tpu_custom_call.1} parent=1 // pred_check
      %p78 = pneg %p77
    $region39: #{tpu_custom_call.1} parent=1 // pred_check_branch
      %80 = sbr.rel (%p78) target = $region41
    $region40: #{tpu_custom_call.1} parent=1 // pred_region
      %81 = vst [vmem:[#allocation2] sm:$0xff] 0.0
      %82 = vst [vmem:[#allocation2 + $0x8] sm:$0xff] 0.0
    $region41: #{tpu_custom_call.1} parent=1 // pred_fallthru
      _
    %p83 = scmp.eq.s32.totalorder 0, 0
    %p84 = pnand %p83, %p77
    %p85 = pneg %p84
    // Predicated region
    $region42: #{tpu_custom_call.1} parent=1 // pred_check
      _
    $region43: #{tpu_custom_call.1} parent=1 // pred_check_branch
      %87 = sbr.rel (%p84) target = $region45
    $region44: #{tpu_custom_call.1} parent=1 // pred_region
      %88 = vst [vmem:[#allocation3] sm:$0xff] 0.0
      %89 = vst [vmem:[#allocation3 + $0x8] sm:$0xff] 0.0
    $region45: #{tpu_custom_call.1} parent=1 // pred_fallthru
      _
    %v90 = vld [vmem:[#allocation4] sm:$0xf]
    %v91 = vld [vmem:[#allocation4 + $0x4] sm:$0xf]
    %v92 = vld [vmem:[#allocation2] sm:$0xff]
    %v93 = vld [vmem:[#allocation2 + $0x8] sm:$0xff]
    %v94 = vld [vmem:[#allocation7] sm:$0xf]
    %v95 = vld [vmem:[#allocation7 + $0x4] sm:$0xf]
    %v96 = vld [vmem:[#allocation7 + $0x8] sm:$0xf]
    %v97 = vld [vmem:[#allocation7 + $0xc] sm:$0xf]
    %v98 = vld [vmem:[#allocation7 + $0x10] sm:$0xf]
    %v99 = vld [vmem:[#allocation7 + $0x14] sm:$0xf]
    %v100 = vld [vmem:[#allocation7 + $0x18] sm:$0xf]
    %v101 = vld [vmem:[#allocation7 + $0x1c] sm:$0xf]
    %v102 = vld [vmem:[#allocation7 + $0x20] sm:$0xf]
    %v103 = vld [vmem:[#allocation7 + $0x24] sm:$0xf]
    %v104 = vld [vmem:[#allocation7 + $0x28] sm:$0xf]
    %v105 = vld [vmem:[#allocation7 + $0x2c] sm:$0xf]
    %v106 = vld [vmem:[#allocation7 + $0x30] sm:$0xf]
    %v107 = vld [vmem:[#allocation7 + $0x34] sm:$0xf]
    %v108 = vld [vmem:[#allocation7 + $0x38] sm:$0xf]
    %v109 = vld [vmem:[#allocation7 + $0x3c] sm:$0xf]
    %v112 = vunpack.c.l.b16 %v90
    %v113 = vunpack.c.l.b16 %v91
    %v114 = vpack.c.b16 %v113, %v112
    %v132 = vunpack.c.l.b16 %v94
    %v133 = vunpack.c.l.b16 %v95
    %v134 = vunpack.c.l.b16 %v96
    %v135 = vunpack.c.l.b16 %v97
    %v136 = vunpack.c.l.b16 %v98
    %v137 = vunpack.c.l.b16 %v99
    %v138 = vunpack.c.l.b16 %v100
    %v139 = vunpack.c.l.b16 %v101
    %v140 = vunpack.c.l.b16 %v102
    %v141 = vunpack.c.l.b16 %v103
    %v142 = vunpack.c.l.b16 %v104
    %v143 = vunpack.c.l.b16 %v105
    %v144 = vunpack.c.l.b16 %v106
    %v145 = vunpack.c.l.b16 %v107
    %v146 = vunpack.c.l.b16 %v108
    %v147 = vunpack.c.l.b16 %v109
    %v148 = vpack.c.b16 %v133, %v132
    %v149 = vpack.c.b16 %v135, %v134
    %v150 = vpack.c.b16 %v137, %v136
    %v151 = vpack.c.b16 %v139, %v138
    %v152 = vpack.c.b16 %v141, %v140
    %v153 = vpack.c.b16 %v143, %v142
    %v154 = vpack.c.b16 %v145, %v144
    %v155 = vpack.c.b16 %v147, %v146
    %164 = vmatprep.subr.bf16.mxu0 0
    %165 = vmatpush1.bf16.msra.mxu0 %v148
    %166 = vmatprep.subr.bf16.mxu0 0
    %167 = vmatpush1.bf16.msra.mxu0 %v149
    %168 = vmatprep.subr.bf16.mxu0 0
    %169 = vmatpush1.bf16.msra.mxu0 %v150
    %170 = vmatprep.subr.bf16.mxu0 0
    %171 = vmatpush1.bf16.msra.mxu0 %v151
    %172 = vmatprep.subr.bf16.mxu0 0
    %173 = vmatpush1.bf16.msra.mxu0 %v152
    %174 = vmatprep.subr.bf16.mxu0 0
    %175 = vmatpush1.bf16.msra.mxu0 %v153
    %176 = vmatprep.subr.bf16.mxu0 0
    %177 = vmatpush1.bf16.msra.mxu0 %v154
    %178 = vmatprep.subr.bf16.mxu0 0
    %179 = vmatpush1.bf16.msra.mxu0 %v155
    %180 = vmatprep.subr.bf16.mxu0 0
    %181 = vmatpush1.bf16.msra.mxu0 0
    %182 = vmatprep.subr.bf16.mxu0 0
    %183 = vmatpush1.bf16.msra.mxu0 0
    %184 = vmatprep.subr.bf16.mxu0 0
    %185 = vmatpush1.bf16.msra.mxu0 0
    %186 = vmatprep.subr.bf16.mxu0 0
    %187 = vmatpush1.bf16.msra.mxu0 0
    %188 = vmatprep.subr.bf16.mxu0 0
    %189 = vmatpush1.bf16.msra.mxu0 0
    %190 = vmatprep.subr.bf16.mxu0 0
    %191 = vmatpush1.bf16.msra.mxu0 0
    %192 = vmatprep.subr.bf16.mxu0 0
    %193 = vmatpush1.bf16.msra.mxu0 0
    %194 = vmatprep.subr.bf16.mxu0 0
    %195 = vmatpush1.bf16.msra.mxu0 0
    %196 = vmatprep.mubr.bf16.mxu0 0
    %197 = vmatmul.mubr.bf16.gmra.mrb[0].mxu0 %v114
    %v198 = vpop.f32.mrb[0].mxu0
    %v199 = vadd.f32 0.0, %v198
    %v200 = vpop.f32.mrb[0].mxu0
    %v201 = vpop.f32.mrb[0].mxu0
    %v202 = vadd.f32 0.0, %v201
    %v203 = vpop.f32.mrb[0].mxu0
    %204 = vdwg.mxu0
    %v205 = vadd.f32 %v92, %v199
    %v206 = vadd.f32 %v93, %v202
    %207 = vst [vmem:[#allocation2] sm:$0xff] %v205
    %208 = vst [vmem:[#allocation2 + $0x8] sm:$0xff] %v206
    // Predicated region
    $region46: #{tpu_custom_call.1} parent=1 // pred_check
      %p209 = pneg %p83
    $region47: #{tpu_custom_call.1} parent=1 // pred_check_branch
      %211 = sbr.rel (%p209) target = $region49
    $region48: #{tpu_custom_call.1} parent=1 // pred_region
      %s212 = smul.u32 0, 128
      %v213 = vld [vmem:[#allocation3] sm:$0xff]
      %v214 = vld [vmem:[#allocation3 + $0x8] sm:$0xff]
      %s215 = sshra.s32 %s212, 3
      %s216 = sand.u32 %s212, 7
      %s217 = smul.addr %s215, 4
      %s218 = scalar_lea.vmem [#allocation9], %s217
      %v219 = vld [vmem:[%s218] sm:$0xf]
      %v220 = vld [vmem:[%s218 + $0x4] sm:$0xf]
      %v221 = vld [vmem:[%s218 + $0x8] sm:$0xf]
      %v222 = vld [vmem:[%s218 + $0xc] sm:$0xf]
      %v223 = vld [vmem:[%s218 + $0x10] sm:$0xf]
      %v224 = vld [vmem:[%s218 + $0x14] sm:$0xf]
      %v225 = vld [vmem:[%s218 + $0x18] sm:$0xf]
      %v226 = vld [vmem:[%s218 + $0x1c] sm:$0xf]
      %v227 = vld [vmem:[%s218 + $0x20] sm:$0xf]
      %v228 = vld [vmem:[%s218 + $0x24] sm:$0xf]
      %v229 = vld [vmem:[%s218 + $0x28] sm:$0xf]
      %v230 = vld [vmem:[%s218 + $0x2c] sm:$0xf]
      %v231 = vld [vmem:[%s218 + $0x30] sm:$0xf]
      %v232 = vld [vmem:[%s218 + $0x34] sm:$0xf]
      %v233 = vld [vmem:[%s218 + $0x38] sm:$0xf]
      %v234 = vld [vmem:[%s218 + $0x3c] sm:$0xf]
      %v251 = vunpack.c.l.b16 %v219
      %v252 = vunpack.c.l.b16 %v220
      %v253 = vunpack.c.l.b16 %v221
      %v254 = vunpack.c.l.b16 %v222
      %v255 = vunpack.c.l.b16 %v223
      %v256 = vunpack.c.l.b16 %v224
      %v257 = vunpack.c.l.b16 %v225
      %v258 = vunpack.c.l.b16 %v226
      %v259 = vunpack.c.l.b16 %v227
      %v260 = vunpack.c.l.b16 %v228
      %v261 = vunpack.c.l.b16 %v229
      %v262 = vunpack.c.l.b16 %v230
      %v263 = vunpack.c.l.b16 %v231
      %v264 = vunpack.c.l.b16 %v232
      %v265 = vunpack.c.l.b16 %v233
      %v266 = vunpack.c.l.b16 %v234
      %v267 = vpack.c.b16 %v252, %v251
      %v268 = vpack.c.b16 %v254, %v253
      %v269 = vpack.c.b16 %v256, %v255
      %v270 = vpack.c.b16 %v258, %v257
      %v271 = vpack.c.b16 %v260, %v259
      %v272 = vpack.c.b16 %v262, %v261
      %v273 = vpack.c.b16 %v264, %v263
      %v274 = vpack.c.b16 %v266, %v265
      %283 = vmatprep.subr.bf16.mxu0 0
      %284 = vmatpush1.bf16.msra.mxu0 %v267
      %285 = vmatprep.subr.bf16.mxu0 0
      %286 = vmatpush1.bf16.msra.mxu0 %v268
      %287 = vmatprep.subr.bf16.mxu0 0
      %288 = vmatpush1.bf16.msra.mxu0 %v269
      %289 = vmatprep.subr.bf16.mxu0 0
      %290 = vmatpush1.bf16.msra.mxu0 %v270
      %291 = vmatprep.subr.bf16.mxu0 0
      %292 = vmatpush1.bf16.msra.mxu0 %v271
      %293 = vmatprep.subr.bf16.mxu0 0
      %294 = vmatpush1.bf16.msra.mxu0 %v272
      %295 = vmatprep.subr.bf16.mxu0 0
      %296 = vmatpush1.bf16.msra.mxu0 %v273
      %297 = vmatprep.subr.bf16.mxu0 0
      %298 = vmatpush1.bf16.msra.mxu0 %v274
      %299 = vmatprep.subr.bf16.mxu0 0
      %300 = vmatpush1.bf16.msra.mxu0 0
      %301 = vmatprep.subr.bf16.mxu0 0
      %302 = vmatpush1.bf16.msra.mxu0 0
      %303 = vmatprep.subr.bf16.mxu0 0
      %304 = vmatpush1.bf16.msra.mxu0 0
      %305 = vmatprep.subr.bf16.mxu0 0
      %306 = vmatpush1.bf16.msra.mxu0 0
      %307 = vmatprep.subr.bf16.mxu0 0
      %308 = vmatpush1.bf16.msra.mxu0 0
      %309 = vmatprep.subr.bf16.mxu0 0
      %310 = vmatpush1.bf16.msra.mxu0 0
      %311 = vmatprep.subr.bf16.mxu0 0
      %312 = vmatpush1.bf16.msra.mxu0 0
      %313 = vmatprep.subr.bf16.mxu0 0
      %314 = vmatpush1.bf16.msra.mxu0 0
      %315 = vmatprep.mubr.bf16.mxu0 0
      %316 = vmatmul.mubr.bf16.gmra.mrb[0].mxu0 %v114
      %v317 = vpop.f32.mrb[0].mxu0
      %v318 = vadd.f32 0.0, %v317
      %v319 = vpop.f32.mrb[0].mxu0
      %v320 = vpop.f32.mrb[0].mxu0
      %v321 = vadd.f32 0.0, %v320
      %v322 = vpop.f32.mrb[0].mxu0
      %323 = vdwg.mxu0
      %v324 = vadd.f32 %v213, %v318
      %v325 = vadd.f32 %v214, %v321
      %326 = vst [vmem:[#allocation3] sm:$0xff] %v324
      %327 = vst [vmem:[#allocation3 + $0x8] sm:$0xff] %v325
    $region49: #{tpu_custom_call.1} parent=1 // pred_fallthru
      _
    // Predicated region
    $region50: #{tpu_custom_call.1} parent=1 // pred_check
      %p328 = pneg %p77
    $region51: #{tpu_custom_call.1} parent=1 // pred_check_branch
      %330 = sbr.rel (%p328) target = $region53
    $region52: #{tpu_custom_call.1} parent=1 // pred_region
      %v331 = vld [vmem:[#allocation3] sm:$0xff]
      %v332 = vld [vmem:[#allocation3 + $0x8] sm:$0xff]
      %v333 = vpack.c.bf16 %v332, %v331
      %v334 = vld [vmem:[#allocation10] sm:$0xf]
      %v335 = vld [vmem:[#allocation10 + $0x4] sm:$0xf]
      %v336 = vld [vmem:[#allocation10 + $0x8] sm:$0xf]
      %v337 = vld [vmem:[#allocation10 + $0xc] sm:$0xf]
      %v338 = vld [vmem:[#allocation10 + $0x10] sm:$0xf]
      %v339 = vld [vmem:[#allocation10 + $0x14] sm:$0xf]
      %v340 = vld [vmem:[#allocation10 + $0x18] sm:$0xf]
      %v341 = vld [vmem:[#allocation10 + $0x1c] sm:$0xf]
      %v342 = vld [vmem:[#allocation10 + $0x20] sm:$0xf]
      %v343 = vld [vmem:[#allocation10 + $0x24] sm:$0xf]
      %v344 = vld [vmem:[#allocation10 + $0x28] sm:$0xf]
      %v345 = vld [vmem:[#allocation10 + $0x2c] sm:$0xf]
      %v346 = vld [vmem:[#allocation10 + $0x30] sm:$0xf]
      %v347 = vld [vmem:[#allocation10 + $0x34] sm:$0xf]
      %v348 = vld [vmem:[#allocation10 + $0x38] sm:$0xf]
      %v349 = vld [vmem:[#allocation10 + $0x3c] sm:$0xf]
      %v366 = vunpack.c.l.b16 %v334
      %v367 = vunpack.c.l.b16 %v335
      %v368 = vunpack.c.l.b16 %v336
      %v369 = vunpack.c.l.b16 %v337
      %v370 = vunpack.c.l.b16 %v338
      %v371 = vunpack.c.l.b16 %v339
      %v372 = vunpack.c.l.b16 %v340
      %v373 = vunpack.c.l.b16 %v341
      %v374 = vunpack.c.l.b16 %v342
      %v375 = vunpack.c.l.b16 %v343
      %v376 = vunpack.c.l.b16 %v344
      %v377 = vunpack.c.l.b16 %v345
      %v378 = vunpack.c.l.b16 %v346
      %v379 = vunpack.c.l.b16 %v347
      %v380 = vunpack.c.l.b16 %v348
      %v381 = vunpack.c.l.b16 %v349
      %v382 = vpack.c.b16 %v367, %v366
      %v383 = vpack.c.b16 %v369, %v368
      %v384 = vpack.c.b16 %v371, %v370
      %v385 = vpack.c.b16 %v373, %v372
      %v386 = vpack.c.b16 %v375, %v374
      %v387 = vpack.c.b16 %v377, %v376
      %v388 = vpack.c.b16 %v379, %v378
      %v389 = vpack.c.b16 %v381, %v380
      %398 = vmatprep.subr.bf16.mxu0 0
      %399 = vmatpush1.bf16.msra.mxu0 %v382
      %400 = vmatprep.subr.bf16.mxu0 0
      %401 = vmatpush1.bf16.msra.mxu0 %v383
      %402 = vmatprep.subr.bf16.mxu0 0
      %403 = vmatpush1.bf16.msra.mxu0 %v384
      %404 = vmatprep.subr.bf16.mxu0 0
      %405 = vmatpush1.bf16.msra.mxu0 %v385
      %406 = vmatprep.subr.bf16.mxu0 0
      %407 = vmatpush1.bf16.msra.mxu0 %v386
      %408 = vmatprep.subr.bf16.mxu0 0
      %409 = vmatpush1.bf16.msra.mxu0 %v387
      %410 = vmatprep.subr.bf16.mxu0 0
      %411 = vmatpush1.bf16.msra.mxu0 %v388
      %412 = vmatprep.subr.bf16.mxu0 0
      %413 = vmatpush1.bf16.msra.mxu0 %v389
      %414 = vmatprep.subr.bf16.mxu0 0
      %415 = vmatpush1.bf16.msra.mxu0 0
      %416 = vmatprep.subr.bf16.mxu0 0
      %417 = vmatpush1.bf16.msra.mxu0 0
      %418 = vmatprep.subr.bf16.mxu0 0
      %419 = vmatpush1.bf16.msra.mxu0 0
      %420 = vmatprep.subr.bf16.mxu0 0
      %421 = vmatpush1.bf16.msra.mxu0 0
      %422 = vmatprep.subr.bf16.mxu0 0
      %423 = vmatpush1.bf16.msra.mxu0 0
      %424 = vmatprep.subr.bf16.mxu0 0
      %425 = vmatpush1.bf16.msra.mxu0 0
      %426 = vmatprep.subr.bf16.mxu0 0
      %427 = vmatpush1.bf16.msra.mxu0 0
      %428 = vmatprep.subr.bf16.mxu0 0
      %429 = vmatpush1.bf16.msra.mxu0 0
      %430 = vmatprep.mubr.bf16.mxu0 0
      %431 = vmatmul.mubr.bf16.gmra.mrb[0].mxu0 %v333
      %v432 = vpop.f32.mrb[0].mxu0
      %v433 = vadd.f32 0.0, %v432
      %v434 = vpop.f32.mrb[0].mxu0
      %v435 = vpop.f32.mrb[0].mxu0
      %v436 = vadd.f32 0.0, %v435
      %v437 = vpop.f32.mrb[0].mxu0
      %438 = vdwg.mxu0
      %v439 = vld [vmem:[#allocation2] sm:$0xff]
      %v440 = vld [vmem:[#allocation2 + $0x8] sm:$0xff]
      %v441 = vadd.f32 %v439, %v433
      %v442 = vadd.f32 %v440, %v436
      %v443 = vld [vmem:[%s2] sm:$0x1]
      %v445 = vlaneseq
      %v446 = vshrl.u32 %v445, 7
      %v447 = vsub.s32 0, %v446
      %v448 = vrot.slane %v443, %v447
      %v450 = vadd.f32 %v441, %v448
      %v451 = vadd.f32 %v442, %v448
      %v452 = vmax.f32 %v450, 0.0
      %v453 = vmax.f32 %v451, 0.0
      %v454 = vpack.c.bf16 %v453, %v452
      %v456 = vunpack.c.l.b16 %v454
      %v457 = vunpack.c.h.b16 %v454
      %v458 = vpack.c.b16 %v456, %v456
      %v459 = vpack.c.b16 %v457, %v457
      %462 = vst [vmem:[#allocation12] sm:$0xf] %v458
      %463 = vst [vmem:[#allocation12 + $0x4] sm:$0xf] %v459
    $region53: #{tpu_custom_call.1} parent=1 // pred_fallthru
      _
    // Predicated region
    $region54: #{tpu_custom_call.1} parent=1 // pred_check
      _
    $region55: #{tpu_custom_call.1} parent=1 // pred_check_branch
      %465 = sbr.rel (0) target = $region57
    $region56: #{tpu_custom_call.1} parent=1 // pred_region
      %s467 = ssub.s32 128, 128
      %468 = vsyncadd [#allocation6], %s467
      %s469 = sshll.u32 [#allocation12], 4
      %s470 = int_to_ptr.vmem [resolvable:$true] %s469
      %475 = dma.vmem_to_hbm [thread:$0]  %s470, 128, %s5, [#allocation6], 64, 64, 4
    $region57: #{tpu_custom_call.1} parent=1 // pred_fallthru
      _
    // Predicated region
    $region58: #{tpu_custom_call.1} parent=1 // pred_check
      _
    $region59: #{tpu_custom_call.1} parent=1 // pred_check_branch
      %477 = sbr.rel (0) target = $region61
    $region60: #{tpu_custom_call.1} parent=1 // pred_region
      %478 = dma.done [#allocation6], 128
    $region61: #{tpu_custom_call.1} parent=1 // pred_fallthru
      _
    %479 = vsyncpa [#allocation5], 1
    %480 = vsyncpa [#allocation8], 1
    %481 = vsyncpa [#allocation11], 1
    %482 = vsyncpa [#allocation6], 1

</llo_original>
